<compile_context>
chip_gen: v7x
topology: tpu7x:2x2x1
jax: 0.10.0
libtpu: 0.0.40
codegen_flags: <defaults>
</compile_context>

<pallas_src>
import jax
import jax.numpy as jnp
from jax.experimental import pallas as pl
from jax.experimental.pallas import tpu as pltpu

LANE = 128


def _round_up(a: int, m: int) -> int:
    return (a + m - 1) // m * m


def feedforward_kernel(x1_ref, x2_ref, w_in_ref, b_in_ref, w_h_ref, b_h_ref,
                       w_out_ref, b_out_ref, out_ref, cov_ref):
    # x1_ref / x2_ref: [3, tb, tn]  (coord leading, batch on sublanes, points on lanes)
    n_idx = pl.program_id(1)
    n_last = pl.num_programs(1) - 1

    # ---- partial covariance for this N tile ---------------------------------
    # cov[b, 3*i + j] = sum_n x[b,0,n,i] * x[b,1,n,j]  (row-major, == torch .view)
    # Fused per-(i,j) multiply + lane reduce: only one [tb, tn] product is live
    # at a time (no [tb,3,3,tn] temporary), VPU mul + XLU reduce per pair.
    x1 = [x1_ref[i] for i in range(3)]                     # 3 x [tb, tn]
    x2 = [x2_ref[j] for j in range(3)]                     # 3 x [tb, tn]
    cols = [jnp.sum(x1[i] * x2[j], axis=-1, keepdims=True)  # [tb, 1]
            for i in range(3) for j in range(3)]
    cov_part = jnp.concatenate(cols, axis=-1)              # [tb, 9]

    @pl.when(n_idx == 0)
    def _():
        cov_ref[...] = jnp.zeros_like(cov_ref)

    cov_ref[...] += cov_part

    # ---- MLP + store only once the reduction over N is complete -------------
    @pl.when(n_idx == n_last)
    def _():
        h = cov_ref[...]                                   # [tb, 9]

        # Input layer (weights pre-transposed to [9, H]); no ReLU here.
        h = jnp.dot(h, w_in_ref[...],
                    preferred_element_type=jnp.float32) + b_in_ref[...]

        # Hidden stack: num_layer x [Linear(H, H), ReLU] (static unroll).
        for l in range(w_h_ref.shape[0]):
            h = jnp.dot(h, w_h_ref[l],
                        preferred_element_type=jnp.float32) + b_h_ref[l]
            h = jnp.maximum(h, 0.0)

        # Output layer, lane-padded to 128 -> full unmasked store.
        out = jnp.dot(h, w_out_ref[...],
                      preferred_element_type=jnp.float32) + b_out_ref[...]
        out_ref[...] = out.astype(out_ref.dtype)


def feedforward(x, w_in, b_in, w_h, b_h, w_out, b_out):
    """x: [B, 2, N, 3]; weights in PyTorch Linear layout ([out, in]), 1-D biases."""
    B, _, N, _ = x.shape
    H = w_in.shape[0]
    L = w_h.shape[0]
    out_dim = w_out.shape[0]
    f32 = jnp.float32

    # ---- wrapper-side layout plumbing ---------------------------------------
    # Dense [3, B, N]: coord dim (=3) leading and full-extent, batch on the
    # sublane axis, points on the lane axis -> kernel x DMAs are unpadded.
    # TODO(synk): consider CompilerParams(allow_input_fusion=...) to fuse this
    # relayout into the pallas_call and avoid the extra HBM pass over x.
    x1 = jnp.transpose(x[:, 0, :, :], (2, 0, 1)).astype(f32)   # [3, B, N]
    x2 = jnp.transpose(x[:, 1, :, :], (2, 0, 1)).astype(f32)   # [3, B, N]

    # Pre-transposed weights ([in, out]) so the kernel never transposes.
    w_in_t = jnp.asarray(w_in, f32).T                           # [9, H]
    w_h_t = jnp.transpose(jnp.asarray(w_h, f32), (0, 2, 1))     # [L, H, H]
    # Lane-padded output head (pad out_dim up to a multiple of 128).
    out_p = max(LANE, _round_up(out_dim, LANE))
    w_out_p = jnp.zeros((H, out_p), f32).at[:, :out_dim].set(jnp.asarray(w_out, f32).T)
    b_out_p = jnp.zeros((1, out_p), f32).at[:, :out_dim].set(jnp.asarray(b_out, f32))
    # 2-D lane-major biases.
    b_in2 = jnp.asarray(b_in, f32).reshape(1, H)
    b_h2 = jnp.asarray(b_h, f32).reshape(L, 1, H)

    # ---- tiling: batch (parallel) x points (reduction) ----------------------
    TB_MAX = 256   # fills the 256-wide MXU on v6e/v7x; >=2 steps -> both v7x TCs
    TN_MAX = 512   # lane-axis tile for the covariance reduction

    if B > TB_MAX:
        tb, B_pad = TB_MAX, _round_up(B, TB_MAX)
    else:
        tb, B_pad = B, B          # block == full dim: no (8,128) constraint
    if N > TN_MAX:
        tn, N_pad = TN_MAX, _round_up(N, TN_MAX)
    else:
        tn, N_pad = N, N

    if (B_pad, N_pad) != (B, N):
        # Zero padding is exact: padded points add 0 to the covariance sum,
        # padded batch rows are sliced off below.
        pad = ((0, 0), (0, B_pad - B), (0, N_pad - N))
        x1 = jnp.pad(x1, pad)
        x2 = jnp.pad(x2, pad)

    grid = (B_pad // tb, N_pad // tn)

    # ---- VMEM budget / cost estimate ----------------------------------------
    param_elems = (w_in_t.size + b_in2.size + w_h_t.size + b_h2.size
                   + w_out_p.size + b_out_p.size)
    vmem_bytes = 4 * (2 * 2 * 3 * tb * tn          # x1, x2 double-buffered
                      + 2 * param_elems            # params (conservatively x2)
                      + 2 * tb * out_p             # output double buffer
                      + tb * 9)                    # cov scratch
    vmem_limit = min(max(int(1.5 * vmem_bytes) + (2 << 20), 16 << 20), 48 << 20)

    flops = B_pad * (2 * N_pad * 9 + 2 * 9 * H + 2 * L * H * H + 2 * H * out_p)
    bytes_accessed = 4 * (x1.size + x2.size + param_elems + B_pad * out_p)

    out_padded = pl.pallas_call(
        feedforward_kernel,
        out_shape=jax.ShapeDtypeStruct((B_pad, out_p), f32),
        grid_spec=pltpu.PrefetchScalarGridSpec(
            num_scalar_prefetch=0,
            grid=grid,
            in_specs=[
                pl.BlockSpec((3, tb, tn), lambda i, n: (0, i, n)),   # x1
                pl.BlockSpec((3, tb, tn), lambda i, n: (0, i, n)),   # x2
                pl.BlockSpec((9, H), lambda i, n: (0, 0)),           # w_in (pre-T)
                pl.BlockSpec((1, H), lambda i, n: (0, 0)),           # b_in
                pl.BlockSpec((L, H, H), lambda i, n: (0, 0, 0)),     # w_h (pre-T)
                pl.BlockSpec((L, 1, H), lambda i, n: (0, 0, 0)),     # b_h
                pl.BlockSpec((H, out_p), lambda i, n: (0, 0)),       # w_out (pre-T, padded)
                pl.BlockSpec((1, out_p), lambda i, n: (0, 0)),       # b_out (padded)
            ],
            out_specs=pl.BlockSpec((tb, out_p), lambda i, n: (i, 0)),
            scratch_shapes=[pltpu.VMEM((tb, 9), jnp.float32)],       # cov accumulator
        ),
        compiler_params=pltpu.CompilerParams(
            dimension_semantics=("parallel", "arbitrary"),
            vmem_limit_bytes=vmem_limit),
        cost_estimate=pl.CostEstimate(
            flops=flops, transcendentals=0, bytes_accessed=bytes_accessed),
    )(x1, x2, w_in_t, b_in2, w_h_t, b_h2, w_out_p, b_out_p)

    # Slice off batch padding and lane padding (cheap wrapper-side view).
    return out_padded[:B, :out_dim]


def feedforward_ref(x, w_in, b_in, w_h, b_h, w_out, b_out):
    # Pure-JAX reference mirroring the PyTorch forward pass.
    x1 = x[:, 0, :, :]
    x2 = x[:, 1, :, :]
    cov = jnp.einsum('bni,bnj->bij', x1, x2).reshape(x.shape[0], -1)
    h = cov @ w_in.T + b_in
    for i in range(w_h.shape[0]):
        h = jnp.maximum(h @ w_h[i].T + b_h[i], 0.0)
    return h @ w_out.T + b_out


if __name__ == "__main__":
    B, N = 2, 16               # batch, number of points
    hidden_size = 32
    num_layer = 2
    out_opt = 'adjugate'
    out_dim = 10 if out_opt == 'adjugate' else 4

    key = jax.random.PRNGKey(0)
    k = jax.random.split(key, 8)

    # Deterministic synthetic parameters (PyTorch Linear weight shape: [out, in]).
    x = jax.random.normal(k[0], (B, 2, N, 3), dtype=jnp.float32)
    w_in = jax.random.normal(k[1], (hidden_size, 9), dtype=jnp.float32) * 0.1
    b_in = jax.random.normal(k[2], (hidden_size,), dtype=jnp.float32) * 0.1
    w_h = jax.random.normal(k[3], (num_layer, hidden_size, hidden_size),
                            dtype=jnp.float32) * 0.1
    b_h = jax.random.normal(k[4], (num_layer, hidden_size),
                            dtype=jnp.float32) * 0.1
    w_out = jax.random.normal(k[5], (out_dim, hidden_size), dtype=jnp.float32) * 0.1
    b_out = jax.random.normal(k[6], (out_dim,), dtype=jnp.float32) * 0.1

    y = feedforward(x, w_in, b_in, w_h, b_h, w_out, b_out)
    jax.block_until_ready(y)

    y_ref = feedforward_ref(x, w_in, b_in, w_h, b_h, w_out, b_out)
    assert y.shape == (B, out_dim), y.shape
    assert jnp.allclose(y, y_ref, atol=1e-4, rtol=1e-4), "mismatch vs JAX reference"

    print("KERNEL_OK")
</pallas_src>

<mosaic_0001>
module attributes {stable_mosaic.version = 11 : i64} {
  func.func @feedforward_kernel(%arg0: i32, %arg1: i32, %arg2: memref<3x2x16xf32, #tpu.memory_space<vmem>>, %arg3: memref<3x2x16xf32, #tpu.memory_space<vmem>>, %arg4: memref<9x32xf32, #tpu.memory_space<vmem>>, %arg5: memref<1x32xf32, #tpu.memory_space<vmem>>, %arg6: memref<2x32x32xf32, #tpu.memory_space<vmem>>, %arg7: memref<2x1x32xf32, #tpu.memory_space<vmem>>, %arg8: memref<32x128xf32, #tpu.memory_space<vmem>>, %arg9: memref<1x128xf32, #tpu.memory_space<vmem>>, %arg10: memref<2x128xf32, #tpu.memory_space<vmem>>, %arg11: memref<2x9xf32, #tpu.memory_space<vmem>>) attributes {dimension_semantics = [#tpu.dimension_semantics<parallel>, #tpu.dimension_semantics<arbitrary>], iteration_bounds = array<i64: 1, 1>, scalar_prefetch = 0 : i64, scratch_operands = 1 : i64, tpu.core_type = #tpu.core_type<tc>, window_params = [{transform_indices = @transform_0, window_bounds = array<i64: 3, 2, 16>}, {transform_indices = @transform_1, window_bounds = array<i64: 3, 2, 16>}, {pipeline_mode = #tpu.pipeline_mode<synchronous>, transform_indices = @transform_2, window_bounds = array<i64: 9, 32>}, {pipeline_mode = #tpu.pipeline_mode<synchronous>, transform_indices = @transform_3, window_bounds = array<i64: 1, 32>}, {pipeline_mode = #tpu.pipeline_mode<synchronous>, transform_indices = @transform_4, window_bounds = array<i64: 2, 32, 32>}, {pipeline_mode = #tpu.pipeline_mode<synchronous>, transform_indices = @transform_5, window_bounds = array<i64: 2, 1, 32>}, {pipeline_mode = #tpu.pipeline_mode<synchronous>, transform_indices = @transform_6, window_bounds = array<i64: 32, 128>}, {pipeline_mode = #tpu.pipeline_mode<synchronous>, transform_indices = @transform_7, window_bounds = array<i64: 1, 128>}, {transform_indices = @transform_8, window_bounds = array<i64: 2, 128>}]} {
    %c0 = arith.constant 0 : index
    %c0_0 = arith.constant 0 : index
    %c0_1 = arith.constant 0 : index
    %0 = vector.load %arg2[%c0, %c0_0, %c0_1] : memref<3x2x16xf32, #tpu.memory_space<vmem>>, vector<1x2x16xf32>
    %1 = vector.shape_cast %0 : vector<1x2x16xf32> to vector<2x16xf32>
    %c1 = arith.constant 1 : index
    %c0_2 = arith.constant 0 : index
    %c0_3 = arith.constant 0 : index
    %2 = vector.load %arg2[%c1, %c0_2, %c0_3] : memref<3x2x16xf32, #tpu.memory_space<vmem>>, vector<1x2x16xf32>
    %3 = vector.shape_cast %2 : vector<1x2x16xf32> to vector<2x16xf32>
    %c2 = arith.constant 2 : index
    %c0_4 = arith.constant 0 : index
    %c0_5 = arith.constant 0 : index
    %4 = vector.load %arg2[%c2, %c0_4, %c0_5] : memref<3x2x16xf32, #tpu.memory_space<vmem>>, vector<1x2x16xf32>
    %5 = vector.shape_cast %4 : vector<1x2x16xf32> to vector<2x16xf32>
    %c0_6 = arith.constant 0 : index
    %c0_7 = arith.constant 0 : index
    %c0_8 = arith.constant 0 : index
    %6 = vector.load %arg3[%c0_6, %c0_7, %c0_8] : memref<3x2x16xf32, #tpu.memory_space<vmem>>, vector<1x2x16xf32>
    %7 = vector.shape_cast %6 : vector<1x2x16xf32> to vector<2x16xf32>
    %c1_9 = arith.constant 1 : index
    %c0_10 = arith.constant 0 : index
    %c0_11 = arith.constant 0 : index
    %8 = vector.load %arg3[%c1_9, %c0_10, %c0_11] : memref<3x2x16xf32, #tpu.memory_space<vmem>>, vector<1x2x16xf32>
    %9 = vector.shape_cast %8 : vector<1x2x16xf32> to vector<2x16xf32>
    %c2_12 = arith.constant 2 : index
    %c0_13 = arith.constant 0 : index
    %c0_14 = arith.constant 0 : index
    %10 = vector.load %arg3[%c2_12, %c0_13, %c0_14] : memref<3x2x16xf32, #tpu.memory_space<vmem>>, vector<1x2x16xf32>
    %11 = vector.shape_cast %10 : vector<1x2x16xf32> to vector<2x16xf32>
    %12 = arith.mulf %1, %7 : vector<2x16xf32>
    %cst = arith.constant dense<0.000000e+00> : vector<2xf32>
    %13 = vector.multi_reduction <add>, %12, %cst [1] : vector<2x16xf32> to vector<2xf32>
    %14 = vector.shape_cast %13 : vector<2xf32> to vector<2x1xf32>
    %15 = arith.mulf %1, %9 : vector<2x16xf32>
    %cst_15 = arith.constant dense<0.000000e+00> : vector<2xf32>
    %16 = vector.multi_reduction <add>, %15, %cst_15 [1] : vector<2x16xf32> to vector<2xf32>
    %17 = vector.shape_cast %16 : vector<2xf32> to vector<2x1xf32>
    %18 = arith.mulf %1, %11 : vector<2x16xf32>
    %cst_16 = arith.constant dense<0.000000e+00> : vector<2xf32>
    %19 = vector.multi_reduction <add>, %18, %cst_16 [1] : vector<2x16xf32> to vector<2xf32>
    %20 = vector.shape_cast %19 : vector<2xf32> to vector<2x1xf32>
    %21 = arith.mulf %3, %7 : vector<2x16xf32>
    %cst_17 = arith.constant dense<0.000000e+00> : vector<2xf32>
    %22 = vector.multi_reduction <add>, %21, %cst_17 [1] : vector<2x16xf32> to vector<2xf32>
    %23 = vector.shape_cast %22 : vector<2xf32> to vector<2x1xf32>
    %24 = arith.mulf %3, %9 : vector<2x16xf32>
    %cst_18 = arith.constant dense<0.000000e+00> : vector<2xf32>
    %25 = vector.multi_reduction <add>, %24, %cst_18 [1] : vector<2x16xf32> to vector<2xf32>
    %26 = vector.shape_cast %25 : vector<2xf32> to vector<2x1xf32>
    %27 = arith.mulf %3, %11 : vector<2x16xf32>
    %cst_19 = arith.constant dense<0.000000e+00> : vector<2xf32>
    %28 = vector.multi_reduction <add>, %27, %cst_19 [1] : vector<2x16xf32> to vector<2xf32>
    %29 = vector.shape_cast %28 : vector<2xf32> to vector<2x1xf32>
    %30 = arith.mulf %5, %7 : vector<2x16xf32>
    %cst_20 = arith.constant dense<0.000000e+00> : vector<2xf32>
    %31 = vector.multi_reduction <add>, %30, %cst_20 [1] : vector<2x16xf32> to vector<2xf32>
    %32 = vector.shape_cast %31 : vector<2xf32> to vector<2x1xf32>
    %33 = arith.mulf %5, %9 : vector<2x16xf32>
    %cst_21 = arith.constant dense<0.000000e+00> : vector<2xf32>
    %34 = vector.multi_reduction <add>, %33, %cst_21 [1] : vector<2x16xf32> to vector<2xf32>
    %35 = vector.shape_cast %34 : vector<2xf32> to vector<2x1xf32>
    %36 = arith.mulf %5, %11 : vector<2x16xf32>
    %cst_22 = arith.constant dense<0.000000e+00> : vector<2xf32>
    %37 = vector.multi_reduction <add>, %36, %cst_22 [1] : vector<2x16xf32> to vector<2xf32>
    %38 = vector.shape_cast %37 : vector<2xf32> to vector<2x1xf32>
    %39 = tpu.concatenate %14, %17, %20, %23, %26, %29, %32, %35, %38 in 1 : vector<2x1xf32>, vector<2x1xf32>, vector<2x1xf32>, vector<2x1xf32>, vector<2x1xf32>, vector<2x1xf32>, vector<2x1xf32>, vector<2x1xf32>, vector<2x1xf32> -> vector<2x9xf32>
    %c0_i32 = arith.constant 0 : i32
    %40 = arith.cmpi eq, %arg1, %c0_i32 : i32
    %41 = arith.extui %40 : i1 to i32
    %c0_i32_23 = arith.constant 0 : i32
    %42 = arith.cmpi ne, %41, %c0_i32_23 : i32
    scf.if %42 {
      %cst_30 = arith.constant 0.000000e+00 : f32
      %49 = vector.broadcast %cst_30 : f32 to vector<2x9xf32>
      %c0_31 = arith.constant 0 : index
      %c0_32 = arith.constant 0 : index
      %50 = vector.load %arg11[%c0_31, %c0_32] : memref<2x9xf32, #tpu.memory_space<vmem>>, vector<2x9xf32>
      tpu.vector_store %arg11[%c0_31, %c0_32], %49 {strides = array<i32>} : memref<2x9xf32, #tpu.memory_space<vmem>>, vector<2x9xf32>,
    } else {
    }
    %c0_24 = arith.constant 0 : index
    %c0_25 = arith.constant 0 : index
    %43 = vector.load %arg11[%c0_24, %c0_25] : memref<2x9xf32, #tpu.memory_space<vmem>>, vector<2x9xf32>
    %44 = arith.addf %43, %39 : vector<2x9xf32>
    %c0_26 = arith.constant 0 : index
    %c0_27 = arith.constant 0 : index
    %45 = vector.load %arg11[%c0_26, %c0_27] : memref<2x9xf32, #tpu.memory_space<vmem>>, vector<2x9xf32>
    tpu.vector_store %arg11[%c0_26, %c0_27], %44 {strides = array<i32>} : memref<2x9xf32, #tpu.memory_space<vmem>>, vector<2x9xf32>,
    %c0_i32_28 = arith.constant 0 : i32
    %46 = arith.cmpi eq, %arg1, %c0_i32_28 : i32
    %47 = arith.extui %46 : i1 to i32
    %c0_i32_29 = arith.constant 0 : i32
    %48 = arith.cmpi ne, %47, %c0_i32_29 : i32
    scf.if %48 {
      %c0_30 = arith.constant 0 : index
      %c0_31 = arith.constant 0 : index
      %49 = vector.load %arg11[%c0_30, %c0_31] : memref<2x9xf32, #tpu.memory_space<vmem>>, vector<2x9xf32>
      %c0_32 = arith.constant 0 : index
      %c0_33 = arith.constant 0 : index
      %50 = vector.load %arg4[%c0_32, %c0_33] : memref<9x32xf32, #tpu.memory_space<vmem>>, vector<9x32xf32>
      %cst_34 = arith.constant dense<0.000000e+00> : vector<2x32xf32>
      %51 = tpu.matmul %49, %50, %cst_34 {dimension_numbers = #tpu.dot_dimension_numbers<[1], [0], [0], [1], [0, 0, 1, 1], [], []>} : vector<2x9xf32>, vector<9x32xf32>, vector<2x32xf32> -> vector<2x32xf32>
      %c0_35 = arith.constant 0 : index
      %c0_36 = arith.constant 0 : index
      %52 = vector.load %arg5[%c0_35, %c0_36] : memref<1x32xf32, #tpu.memory_space<vmem>>, vector<1x32xf32>
      %53 = vector.broadcast %52 : vector<1x32xf32> to vector<2x32xf32>
      %54 = arith.addf %51, %53 : vector<2x32xf32>
      %c0_37 = arith.constant 0 : index
      %c0_38 = arith.constant 0 : index
      %c0_39 = arith.constant 0 : index
      %55 = vector.load %arg6[%c0_37, %c0_38, %c0_39] : memref<2x32x32xf32, #tpu.memory_space<vmem>>, vector<1x32x32xf32>
      %56 = vector.shape_cast %55 : vector<1x32x32xf32> to vector<32x32xf32>
      %cst_40 = arith.constant dense<0.000000e+00> : vector<2x32xf32>
      %57 = tpu.matmul %54, %56, %cst_40 {dimension_numbers = #tpu.dot_dimension_numbers<[1], [0], [0], [1], [0, 0, 1, 1], [], []>} : vector<2x32xf32>, vector<32x32xf32>, vector<2x32xf32> -> vector<2x32xf32>
      %c0_41 = arith.constant 0 : index
      %c0_42 = arith.constant 0 : index
      %c0_43 = arith.constant 0 : index
      %58 = vector.load %arg7[%c0_41, %c0_42, %c0_43] : memref<2x1x32xf32, #tpu.memory_space<vmem>>, vector<1x1x32xf32>
      %59 = vector.shape_cast %58 : vector<1x1x32xf32> to vector<1x32xf32>
      %60 = vector.broadcast %59 : vector<1x32xf32> to vector<2x32xf32>
      %61 = arith.addf %57, %60 : vector<2x32xf32>
      %cst_44 = arith.constant 0.000000e+00 : f32
      %62 = vector.broadcast %cst_44 : f32 to vector<2x32xf32>
      %63 = arith.maximumf %61, %62 : vector<2x32xf32>
      %c1_45 = arith.constant 1 : index
      %c0_46 = arith.constant 0 : index
      %c0_47 = arith.constant 0 : index
      %64 = vector.load %arg6[%c1_45, %c0_46, %c0_47] : memref<2x32x32xf32, #tpu.memory_space<vmem>>, vector<1x32x32xf32>
      %65 = vector.shape_cast %64 : vector<1x32x32xf32> to vector<32x32xf32>
      %cst_48 = arith.constant dense<0.000000e+00> : vector<2x32xf32>
      %66 = tpu.matmul %63, %65, %cst_48 {dimension_numbers = #tpu.dot_dimension_numbers<[1], [0], [0], [1], [0, 0, 1, 1], [], []>} : vector<2x32xf32>, vector<32x32xf32>, vector<2x32xf32> -> vector<2x32xf32>
      %c1_49 = arith.constant 1 : index
      %c0_50 = arith.constant 0 : index
      %c0_51 = arith.constant 0 : index
      %67 = vector.load %arg7[%c1_49, %c0_50, %c0_51] : memref<2x1x32xf32, #tpu.memory_space<vmem>>, vector<1x1x32xf32>
      %68 = vector.shape_cast %67 : vector<1x1x32xf32> to vector<1x32xf32>
      %69 = vector.broadcast %68 : vector<1x32xf32> to vector<2x32xf32>
      %70 = arith.addf %66, %69 : vector<2x32xf32>
      %cst_52 = arith.constant 0.000000e+00 : f32
      %71 = vector.broadcast %cst_52 : f32 to vector<2x32xf32>
      %72 = arith.maximumf %70, %71 : vector<2x32xf32>
      %c0_53 = arith.constant 0 : index
      %c0_54 = arith.constant 0 : index
      %73 = vector.load %arg8[%c0_53, %c0_54] : memref<32x128xf32, #tpu.memory_space<vmem>>, vector<32x128xf32>
      %cst_55 = arith.constant dense<0.000000e+00> : vector<2x128xf32>
      %74 = tpu.matmul %72, %73, %cst_55 {dimension_numbers = #tpu.dot_dimension_numbers<[1], [0], [0], [1], [0, 0, 1, 1], [], []>} : vector<2x32xf32>, vector<32x128xf32>, vector<2x128xf32> -> vector<2x128xf32>
      %c0_56 = arith.constant 0 : index
      %c0_57 = arith.constant 0 : index
      %75 = vector.load %arg9[%c0_56, %c0_57] : memref<1x128xf32, #tpu.memory_space<vmem>>, vector<1x128xf32>
      %76 = vector.broadcast %75 : vector<1x128xf32> to vector<2x128xf32>
      %77 = arith.addf %74, %76 : vector<2x128xf32>
      %c0_58 = arith.constant 0 : index
      %c0_59 = arith.constant 0 : index
      %78 = vector.load %arg10[%c0_58, %c0_59] : memref<2x128xf32, #tpu.memory_space<vmem>>, vector<2x128xf32>
      tpu.vector_store %arg10[%c0_58, %c0_59], %77 {strides = array<i32>} : memref<2x128xf32, #tpu.memory_space<vmem>>, vector<2x128xf32>,
    } else {
    }
    return
  }
  func.func @transform_0(%arg0: i32, %arg1: i32) -> (i32, i32, i32) {
    %c0_i32 = arith.constant 0 : i32
    %c0_i32_0 = arith.constant 0 : i32
    return %c0_i32, %arg0, %arg1 : i32, i32, i32
  }
  func.func @transform_1(%arg0: i32, %arg1: i32) -> (i32, i32, i32) {
    %c0_i32 = arith.constant 0 : i32
    %c0_i32_0 = arith.constant 0 : i32
    return %c0_i32, %arg0, %arg1 : i32, i32, i32
  }
  func.func @transform_2(%arg0: i32, %arg1: i32) -> (i32, i32) {
    %c0_i32 = arith.constant 0 : i32
    %c0_i32_0 = arith.constant 0 : i32
    %c0_i32_1 = arith.constant 0 : i32
    return %c0_i32, %c0_i32_0 : i32, i32
  }
  func.func @transform_3(%arg0: i32, %arg1: i32) -> (i32, i32) {
    %c0_i32 = arith.constant 0 : i32
    %c0_i32_0 = arith.constant 0 : i32
    %c0_i32_1 = arith.constant 0 : i32
    return %c0_i32, %c0_i32_0 : i32, i32
  }
  func.func @transform_4(%arg0: i32, %arg1: i32) -> (i32, i32, i32) {
    %c0_i32 = arith.constant 0 : i32
    %c0_i32_0 = arith.constant 0 : i32
    %c0_i32_1 = arith.constant 0 : i32
    %c0_i32_2 = arith.constant 0 : i32
    return %c0_i32, %c0_i32_0, %c0_i32_1 : i32, i32, i32
  }
  func.func @transform_5(%arg0: i32, %arg1: i32) -> (i32, i32, i32) {
    %c0_i32 = arith.constant 0 : i32
    %c0_i32_0 = arith.constant 0 : i32
    %c0_i32_1 = arith.constant 0 : i32
    %c0_i32_2 = arith.constant 0 : i32
    return %c0_i32, %c0_i32_0, %c0_i32_1 : i32, i32, i32
  }
  func.func @transform_6(%arg0: i32, %arg1: i32) -> (i32, i32) {
    %c0_i32 = arith.constant 0 : i32
    %c0_i32_0 = arith.constant 0 : i32
    %c0_i32_1 = arith.constant 0 : i32
    return %c0_i32, %c0_i32_0 : i32, i32
  }
  func.func @transform_7(%arg0: i32, %arg1: i32) -> (i32, i32) {
    %c0_i32 = arith.constant 0 : i32
    %c0_i32_0 = arith.constant 0 : i32
    %c0_i32_1 = arith.constant 0 : i32
    return %c0_i32, %c0_i32_0 : i32, i32
  }
  func.func @transform_8(%arg0: i32, %arg1: i32) -> (i32, i32) {
    %c0_i32 = arith.constant 0 : i32
    %c0_i32_0 = arith.constant 0 : i32
    return %arg0, %c0_i32 : i32, i32
  }
}

</mosaic_0001>

<llo_original>
// kernel: tpu_custom_call.1
$region0: #{tpu_custom_call.1}
  #allocation0 [shape = 'u32[]', space=smem, size = 0x4, offset = 0x4, fixed_abs, tag = 'smem constant byte address 0x4 - core index']
  #allocation1 [shape = 'u32[144,128]{1,0:T(1,128)}', space=vmem, size = 0x12000, scoped, tag = 'internal scratch']
  #allocation2 [shape = 'f32[2,9]{1,0:T(2,128)}', space=vmem, size = 0x400, scoped, tag = 'scratch operand']
  %s0 = inlined_call_operand.hbm [shape: f32[3,2,16], index: 0, kind: input, shape index: {}]
  %s1 = inlined_call_operand.hbm [shape: f32[3,2,16], index: 1, kind: input, shape index: {}]
  %s2 = inlined_call_operand.hbm [shape: f32[9,32], index: 2, kind: input, shape index: {}]
  %s3 = inlined_call_operand.vmem [shape: f32[1,32], index: 3, kind: input, shape index: {}]
  %s4 = inlined_call_operand.hbm [shape: f32[2,32,32], index: 4, kind: input, shape index: {}]
  %s5 = inlined_call_operand.vmem [shape: f32[2,1,32], index: 5, kind: input, shape index: {}]
  %s6 = inlined_call_operand.hbm [shape: f32[32,128], index: 6, kind: input, shape index: {}]
  %s7 = inlined_call_operand.vmem [shape: f32[1,128], index: 7, kind: input, shape index: {}]
  %s8 = inlined_call_operand.hbm [shape: f32[2,128], index: 8, kind: output, shape index: {}]
  %s9 = sld [smem:[#allocation0]]
  $region70: #{tpu_custom_call.1} parent=0
    _
  %s11 = ssub.s32 1, %s9
  %s12 = scalar_select 0, %s11, %s9
  $region1: #{tpu_custom_call.1} parent=0
    #allocation3 [shape = 'u8[3072]{0}', space=vmem, size = 0xc00, scoped, tag = 'input window, operand 0, single buffered']
    #allocation4 [shape = 's32[1]{0}', space=sflag, size = 0x4, scoped, tag = 'scoped memory for tpu_custom_call.1']
    #allocation5 [shape = 's32[1]{0}', space=sflag, size = 0x4, scoped, tag = 'scoped memory for tpu_custom_call.1']
    #allocation6 [shape = 'u8[3072]{0}', space=vmem, size = 0xc00, scoped, tag = 'input window, operand 1, single buffered']
    #allocation7 [shape = 's32[1]{0}', space=sflag, size = 0x4, scoped, tag = 'scoped memory for tpu_custom_call.1']
    #allocation8 [shape = 'u8[8192]{0}', space=vmem, size = 0x2000, scoped, tag = 'input window, operand 2, single buffered']
    #allocation9 [shape = 'u8[32768]{0}', space=vmem, size = 0x8000, scoped, tag = 'input window, operand 4, single buffered']
    #allocation10 [shape = 's32[1]{0}', space=sflag, size = 0x4, scoped, tag = 'scoped memory for tpu_custom_call.1']
    #allocation11 [shape = 'u8[16384]{0}', space=vmem, size = 0x4000, scoped, tag = 'input window, operand 6, single buffered']
    #allocation12 [shape = 'u8[1024]{0}', space=vmem, size = 0x400, scoped, tag = 'output window, operand 0, single buffered']
    %13 = vsyncpa [#allocation4], 0
    %14 = vsyncpa [#allocation7], 0
    %15 = vsyncpa [#allocation10], 0
    %16 = vsyncpa [#allocation5], 0
    // Predicated region
    $region2: #{tpu_custom_call.1} parent=1 // pred_check
      _
    $region3: #{tpu_custom_call.1} parent=1 // pred_check_branch
      %18 = sbr.rel (0) target = $region5
    $region4: #{tpu_custom_call.1} parent=1 // pred_region
      %s20 = ssub.s32 96, 96
      %21 = vsyncadd [#allocation4], %s20
      %s22 = sshll.u32 [#allocation3], 4
      %s23 = int_to_ptr.vmem [resolvable:$true] %s22
      %28 = dma.hbm_to_vmem [thread:$0]  %s0, 96, %s23, [#allocation4], 32, 32, 2
    $region5: #{tpu_custom_call.1} parent=1 // pred_fallthru
      _
    // Predicated region
    $region6: #{tpu_custom_call.1} parent=1 // pred_check
      _
    $region7: #{tpu_custom_call.1} parent=1 // pred_check_branch
      %30 = sbr.rel (0) target = $region9
    $region8: #{tpu_custom_call.1} parent=1 // pred_region
      %s32 = ssub.s32 96, 96
      %33 = vsyncadd [#allocation7], %s32
      %s34 = sshll.u32 [#allocation6], 4
      %s35 = int_to_ptr.vmem [resolvable:$true] %s34
      %40 = dma.hbm_to_vmem [thread:$0]  %s1, 96, %s35, [#allocation7], 32, 32, 2
    $region9: #{tpu_custom_call.1} parent=1 // pred_fallthru
      _
    // Predicated region
    $region10: #{tpu_custom_call.1} parent=1 // pred_check
      _
    $region11: #{tpu_custom_call.1} parent=1 // pred_check_branch
      %42 = sbr.rel (0) target = $region13
    $region12: #{tpu_custom_call.1} parent=1 // pred_region
      %s44 = ssub.s32 256, 256
      %45 = vsyncadd [#allocation7], %s44
      %s46 = sshll.u32 [#allocation8], 4
      %s47 = int_to_ptr.vmem [resolvable:$true] %s46
      %52 = dma.hbm_to_vmem [thread:$0]  %s2, 256, %s47, [#allocation7], 128, 128, 8
    $region13: #{tpu_custom_call.1} parent=1 // pred_fallthru
      _
    // Predicated region
    $region14: #{tpu_custom_call.1} parent=1 // pred_check
      _
    $region15: #{tpu_custom_call.1} parent=1 // pred_check_branch
      %54 = sbr.rel (0) target = $region17
    $region16: #{tpu_custom_call.1} parent=1 // pred_region
      _
    $region17: #{tpu_custom_call.1} parent=1 // pred_fallthru
      _
    // Predicated region
    $region18: #{tpu_custom_call.1} parent=1 // pred_check
      _
    $region19: #{tpu_custom_call.1} parent=1 // pred_check_branch
      %56 = sbr.rel (0) target = $region21
    $region20: #{tpu_custom_call.1} parent=1 // pred_region
      %s58 = ssub.s32 1024, 1024
      %59 = vsyncadd [#allocation10], %s58
      %s60 = sshll.u32 [#allocation9], 4
      %s61 = int_to_ptr.vmem [resolvable:$true] %s60
      %66 = dma.hbm_to_vmem [thread:$0]  %s4, 1024, %s61, [#allocation10], 128, 128, 8
    $region21: #{tpu_custom_call.1} parent=1 // pred_fallthru
      _
    // Predicated region
    $region22: #{tpu_custom_call.1} parent=1 // pred_check
      _
    $region23: #{tpu_custom_call.1} parent=1 // pred_check_branch
      %68 = sbr.rel (0) target = $region25
    $region24: #{tpu_custom_call.1} parent=1 // pred_region
      _
    $region25: #{tpu_custom_call.1} parent=1 // pred_fallthru
      _
    // Predicated region
    $region26: #{tpu_custom_call.1} parent=1 // pred_check
      _
    $region27: #{tpu_custom_call.1} parent=1 // pred_check_branch
      %70 = sbr.rel (0) target = $region29
    $region28: #{tpu_custom_call.1} parent=1 // pred_region
      %s72 = ssub.s32 512, 512
      %73 = vsyncadd [#allocation10], %s72
      %s74 = sshll.u32 [#allocation11], 4
      %s75 = int_to_ptr.vmem [resolvable:$true] %s74
      %80 = dma.hbm_to_vmem [thread:$0]  %s6, 512, %s75, [#allocation10], 128, 128, 8
    $region29: #{tpu_custom_call.1} parent=1 // pred_fallthru
      _
    // Predicated region
    $region30: #{tpu_custom_call.1} parent=1 // pred_check
      _
    $region31: #{tpu_custom_call.1} parent=1 // pred_check_branch
      %82 = sbr.rel (0) target = $region33
    $region32: #{tpu_custom_call.1} parent=1 // pred_region
      _
    $region33: #{tpu_custom_call.1} parent=1 // pred_fallthru
      _
    // Predicated region
    $region34: #{tpu_custom_call.1} parent=1 // pred_check
      _
    $region35: #{tpu_custom_call.1} parent=1 // pred_check_branch
      %84 = sbr.rel (0) target = $region37
    $region36: #{tpu_custom_call.1} parent=1 // pred_region
      %85 = dma.done [#allocation4], 96
    $region37: #{tpu_custom_call.1} parent=1 // pred_fallthru
      _
    // Predicated region
    $region38: #{tpu_custom_call.1} parent=1 // pred_check
      _
    $region39: #{tpu_custom_call.1} parent=1 // pred_check_branch
      %87 = sbr.rel (0) target = $region41
    $region40: #{tpu_custom_call.1} parent=1 // pred_region
      %88 = dma.done [#allocation7], 96
    $region41: #{tpu_custom_call.1} parent=1 // pred_fallthru
      _
    // Predicated region
    $region42: #{tpu_custom_call.1} parent=1 // pred_check
      _
    $region43: #{tpu_custom_call.1} parent=1 // pred_check_branch
      %90 = sbr.rel (0) target = $region45
    $region44: #{tpu_custom_call.1} parent=1 // pred_region
      %91 = dma.done [#allocation7], 256
    $region45: #{tpu_custom_call.1} parent=1 // pred_fallthru
      _
    // Predicated region
    $region46: #{tpu_custom_call.1} parent=1 // pred_check
      _
    $region47: #{tpu_custom_call.1} parent=1 // pred_check_branch
      %93 = sbr.rel (0) target = $region49
    $region48: #{tpu_custom_call.1} parent=1 // pred_region
      %94 = dma.done [#allocation10], 1024
    $region49: #{tpu_custom_call.1} parent=1 // pred_fallthru
      _
    // Predicated region
    $region50: #{tpu_custom_call.1} parent=1 // pred_check
      _
    $region51: #{tpu_custom_call.1} parent=1 // pred_check_branch
      %96 = sbr.rel (0) target = $region53
    $region52: #{tpu_custom_call.1} parent=1 // pred_region
      %97 = dma.done [#allocation10], 512
    $region53: #{tpu_custom_call.1} parent=1 // pred_fallthru
      _
    %v98 = vld [vmem:[#allocation3] sm:$0x3]
    %s99 = scalar_lea.vmem [#allocation3], 2
    %v100 = vld [vmem:[%s99] sm:$0x3]
    %s101 = scalar_lea.vmem [#allocation3], 4
    %v102 = vld [vmem:[%s101] sm:$0x3]
    %v103 = vld [vmem:[#allocation6] sm:$0x3]
    %s104 = scalar_lea.vmem [#allocation6], 2
    %v105 = vld [vmem:[%s104] sm:$0x3]
    %s106 = scalar_lea.vmem [#allocation6], 4
    %v107 = vld [vmem:[%s106] sm:$0x3]
    %v108 = vmul.f32 %v98, %v103
    %vm109 = vcmask 123904
    %v110 = vsel %vm109, %v108, 0.0
    %111 = vadd.xlane.f32.xlu0 %v110
    %v112 = vpop.xlane.xlu0 %111
    %v113 = vmul.f32 %v98, %v105
    %v114 = vsel %vm109, %v113, 0.0
    %115 = vadd.xlane.f32.xlu0 %v114
    %v116 = vpop.xlane.xlu0 %115
    %v117 = vmul.f32 %v98, %v107
    %v118 = vsel %vm109, %v117, 0.0
    %119 = vadd.xlane.f32.xlu0 %v118
    %v120 = vpop.xlane.xlu0 %119
    %v121 = vmul.f32 %v100, %v103
    %v122 = vsel %vm109, %v121, 0.0
    %123 = vadd.xlane.f32.xlu0 %v122
    %v124 = vpop.xlane.xlu0 %123
    %v125 = vmul.f32 %v100, %v105
    %v126 = vsel %vm109, %v125, 0.0
    %127 = vadd.xlane.f32.xlu0 %v126
    %v128 = vpop.xlane.xlu0 %127
    %v129 = vmul.f32 %v100, %v107
    %v130 = vsel %vm109, %v129, 0.0
    %131 = vadd.xlane.f32.xlu0 %v130
    %v132 = vpop.xlane.xlu0 %131
    %v133 = vmul.f32 %v102, %v103
    %v134 = vsel %vm109, %v133, 0.0
    %135 = vadd.xlane.f32.xlu0 %v134
    %v136 = vpop.xlane.xlu0 %135
    %v137 = vmul.f32 %v102, %v105
    %v138 = vsel %vm109, %v137, 0.0
    %139 = vadd.xlane.f32.xlu0 %v138
    %v140 = vpop.xlane.xlu0 %139
    %v141 = vmul.f32 %v102, %v107
    %v142 = vsel %vm109, %v141, 0.0
    %143 = vadd.xlane.f32.xlu0 %v142
    %v144 = vpop.xlane.xlu0 %143
    %vm145 = vcmask 7168
    %v146 = vsel %vm145, %v112, %v116
    %vm147 = vcmask 15360
    %v148 = vsel %vm147, %v146, %v120
    %vm149 = vcmask 23552
    %v150 = vsel %vm149, %v148, %v124
    %vm151 = vcmask 31744
    %v152 = vsel %vm151, %v150, %v128
    %vm153 = vcmask 39936
    %v154 = vsel %vm153, %v152, %v132
    %vm155 = vcmask 48128
    %v156 = vsel %vm155, %v154, %v136
    %vm157 = vcmask 56320
    %v158 = vsel %vm157, %v156, %v140
    %vm159 = vcmask 64512
    %v160 = vsel %vm159, %v158, %v144
    %p161 = scmp.eq.s32.totalorder 0, 0
    // Predicated region
    $region54: #{tpu_custom_call.1} parent=1 // pred_check
      %p162 = pneg %p161
    $region55: #{tpu_custom_call.1} parent=1 // pred_check_branch
      %164 = sbr.rel (%p162) target = $region57
    $region56: #{tpu_custom_call.1} parent=1 // pred_region
      %vm165 = vcmask 66560
      %166 = vst.msk [vmem:[#allocation2] sm:$0x3] %vm165, 0.0
    $region57: #{tpu_custom_call.1} parent=1 // pred_fallthru
      _
    %v167 = vld [vmem:[#allocation2] sm:$0x3]
    %v168 = vadd.f32 %v167, %v160
    %vm169 = vcmask 66560
    %170 = vst.msk [vmem:[#allocation2] sm:$0x3] %vm169, %v168
    // Predicated region
    $region58: #{tpu_custom_call.1} parent=1 // pred_check
      %p171 = pneg %p161
    $region59: #{tpu_custom_call.1} parent=1 // pred_check_branch
      %173 = sbr.rel (%p171) target = $region61
    $region60: #{tpu_custom_call.1} parent=1 // pred_region
      %v174 = vld [vmem:[#allocation2] sm:$0x3]
      %v175 = vld [vmem:[#allocation8] sm:$0xff]
      %v176 = vld [vmem:[#allocation8 + $0x8] sm:$0x1]
      %v177 = vld [vmem:[%s3] sm:$0x1]
      %v179 = vlaneseq
      %v180 = vshrl.u32 %v179, 7
      %v181 = vsub.s32 0, %v180
      %v182 = vrot.slane %v177, %v181
      %vm184 = vcmask 72704
      %v186 = vsel %vm184, %v174, 0
      %vm188 = vcmask 1040384
      %v190 = vsel %vm188, %v176, 0
      %192 = vmatprep.subr.mxu0 0.0
      %193 = vmatpush1.msra.mxu0 %v175
      %194 = vmatprep.subr.mxu0 0.0
      %195 = vmatpush1.msra.mxu0 %v190
      %196 = vmatprep.subr.mxu0 0.0
      %197 = vmatpush1.msra.mxu0 0.0
      %198 = vmatprep.subr.mxu0 0.0
      %199 = vmatpush1.msra.mxu0 0.0
      %200 = vmatprep.subr.mxu0 0.0
      %201 = vmatpush1.msra.mxu0 0.0
      %202 = vmatprep.subr.mxu0 0.0
      %203 = vmatpush1.msra.mxu0 0.0
      %204 = vmatprep.subr.mxu0 0.0
      %205 = vmatpush1.msra.mxu0 0.0
      %206 = vmatprep.subr.mxu0 0.0
      %207 = vmatpush1.msra.mxu0 0.0
      %208 = vmatprep.subr.mxu0 0.0
      %209 = vmatpush1.msra.mxu0 0.0
      %210 = vmatprep.subr.mxu0 0.0
      %211 = vmatpush1.msra.mxu0 0.0
      %212 = vmatprep.subr.mxu0 0.0
      %213 = vmatpush1.msra.mxu0 0.0
      %214 = vmatprep.subr.mxu0 0.0
      %215 = vmatpush1.msra.mxu0 0.0
      %216 = vmatprep.subr.mxu0 0.0
      %217 = vmatpush1.msra.mxu0 0.0
      %218 = vmatprep.subr.mxu0 0.0
      %219 = vmatpush1.msra.mxu0 0.0
      %220 = vmatprep.subr.mxu0 0.0
      %221 = vmatpush1.msra.mxu0 0.0
      %222 = vmatprep.subr.mxu0 0.0
      %223 = vmatpush1.msra.mxu0 0.0
      %224 = vmatprep.subr.mxu0 0.0
      %225 = vmatpush1.msra.mxu0 0.0
      %226 = vmatprep.subr.mxu0 0.0
      %227 = vmatpush1.msra.mxu0 0.0
      %228 = vmatprep.subr.mxu0 0.0
      %229 = vmatpush1.msra.mxu0 0.0
      %230 = vmatprep.subr.mxu0 0.0
      %231 = vmatpush1.msra.mxu0 0.0
      %232 = vmatprep.subr.mxu0 0.0
      %233 = vmatpush1.msra.mxu0 0.0
      %234 = vmatprep.subr.mxu0 0.0
      %235 = vmatpush1.msra.mxu0 0.0
      %236 = vmatprep.subr.mxu0 0.0
      %237 = vmatpush1.msra.mxu0 0.0
      %238 = vmatprep.subr.mxu0 0.0
      %239 = vmatpush1.msra.mxu0 0.0
      %240 = vmatprep.subr.mxu0 0.0
      %241 = vmatpush1.msra.mxu0 0.0
      %242 = vmatprep.subr.mxu0 0.0
      %243 = vmatpush1.msra.mxu0 0.0
      %244 = vmatprep.subr.mxu0 0.0
      %245 = vmatpush1.msra.mxu0 0.0
      %246 = vmatprep.subr.mxu0 0.0
      %247 = vmatpush1.msra.mxu0 0.0
      %248 = vmatprep.subr.mxu0 0.0
      %249 = vmatpush1.msra.mxu0 0.0
      %250 = vmatprep.subr.mxu0 0.0
      %251 = vmatpush1.msra.mxu0 0.0
      %252 = vmatprep.subr.mxu0 0.0
      %253 = vmatpush1.msra.mxu0 0.0
      %254 = vmatprep.subr.mxu0 0.0
      %255 = vmatpush1.msra.mxu0 0.0
      %256 = vmatprep.mubr.f32.mxu0 0.0
      %257 = vmatmul.mubr.f32.gmra.mrb[0].mxu0 %v186
      %v258 = vpop.f32.mrb[0].mxu0
      %v259 = vadd.f32 %v182, %v258
      %v260 = vpop.f32.mrb[0].mxu0
      %261 = vdwg.mxu0
      %v262 = vld [vmem:[#allocation9] sm:$0xff]
      %v263 = vld [vmem:[#allocation9 + $0x8] sm:$0xff]
      %v264 = vld [vmem:[#allocation9 + $0x10] sm:$0xff]
      %v265 = vld [vmem:[#allocation9 + $0x18] sm:$0xff]
      %v266 = vld [vmem:[%s5] sm:$0x1]
      %v268 = vlaneseq
      %v269 = vshrl.u32 %v268, 7
      %v270 = vsub.s32 0, %v269
      %v271 = vrot.slane %v266, %v270
      %vm273 = vcmask 261120
      %v275 = vsel %vm273, %v259, 0
      %277 = vmatprep.subr.mxu0 0.0
      %278 = vmatpush1.msra.mxu0 %v262
      %279 = vmatprep.subr.mxu0 0.0
      %280 = vmatpush1.msra.mxu0 %v263
      %281 = vmatprep.subr.mxu0 0.0
      %282 = vmatpush1.msra.mxu0 %v264
      %283 = vmatprep.subr.mxu0 0.0
      %284 = vmatpush1.msra.mxu0 %v265
      %285 = vmatprep.subr.mxu0 0.0
      %286 = vmatpush1.msra.mxu0 0.0
      %287 = vmatprep.subr.mxu0 0.0
      %288 = vmatpush1.msra.mxu0 0.0
      %289 = vmatprep.subr.mxu0 0.0
      %290 = vmatpush1.msra.mxu0 0.0
      %291 = vmatprep.subr.mxu0 0.0
      %292 = vmatpush1.msra.mxu0 0.0
      %293 = vmatprep.subr.mxu0 0.0
      %294 = vmatpush1.msra.mxu0 0.0
      %295 = vmatprep.subr.mxu0 0.0
      %296 = vmatpush1.msra.mxu0 0.0
      %297 = vmatprep.subr.mxu0 0.0
      %298 = vmatpush1.msra.mxu0 0.0
      %299 = vmatprep.subr.mxu0 0.0
      %300 = vmatpush1.msra.mxu0 0.0
      %301 = vmatprep.subr.mxu0 0.0
      %302 = vmatpush1.msra.mxu0 0.0
      %303 = vmatprep.subr.mxu0 0.0
      %304 = vmatpush1.msra.mxu0 0.0
      %305 = vmatprep.subr.mxu0 0.0
      %306 = vmatpush1.msra.mxu0 0.0
      %307 = vmatprep.subr.mxu0 0.0
      %308 = vmatpush1.msra.mxu0 0.0
      %309 = vmatprep.subr.mxu0 0.0
      %310 = vmatpush1.msra.mxu0 0.0
      %311 = vmatprep.subr.mxu0 0.0
      %312 = vmatpush1.msra.mxu0 0.0
      %313 = vmatprep.subr.mxu0 0.0
      %314 = vmatpush1.msra.mxu0 0.0
      %315 = vmatprep.subr.mxu0 0.0
      %316 = vmatpush1.msra.mxu0 0.0
      %317 = vmatprep.subr.mxu0 0.0
      %318 = vmatpush1.msra.mxu0 0.0
      %319 = vmatprep.subr.mxu0 0.0
      %320 = vmatpush1.msra.mxu0 0.0
      %321 = vmatprep.subr.mxu0 0.0
      %322 = vmatpush1.msra.mxu0 0.0
      %323 = vmatprep.subr.mxu0 0.0
      %324 = vmatpush1.msra.mxu0 0.0
      %325 = vmatprep.subr.mxu0 0.0
      %326 = vmatpush1.msra.mxu0 0.0
      %327 = vmatprep.subr.mxu0 0.0
      %328 = vmatpush1.msra.mxu0 0.0
      %329 = vmatprep.subr.mxu0 0.0
      %330 = vmatpush1.msra.mxu0 0.0
      %331 = vmatprep.subr.mxu0 0.0
      %332 = vmatpush1.msra.mxu0 0.0
      %333 = vmatprep.subr.mxu0 0.0
      %334 = vmatpush1.msra.mxu0 0.0
      %335 = vmatprep.subr.mxu0 0.0
      %336 = vmatpush1.msra.mxu0 0.0
      %337 = vmatprep.subr.mxu0 0.0
      %338 = vmatpush1.msra.mxu0 0.0
      %339 = vmatprep.subr.mxu0 0.0
      %340 = vmatpush1.msra.mxu0 0.0
      %341 = vmatprep.mubr.f32.mxu0 0.0
      %342 = vmatmul.mubr.f32.gmra.mrb[0].mxu0 %v275
      %v343 = vpop.f32.mrb[0].mxu0
      %v344 = vadd.f32 %v271, %v343
      %v345 = vpop.f32.mrb[0].mxu0
      %346 = vdwg.mxu0
      %v347 = vmax.f32 %v344, 0.0
      %s348 = scalar_lea.vmem [#allocation9], 32
      %v349 = vld [vmem:[%s348] sm:$0xff]
      %v350 = vld [vmem:[%s348 + $0x8] sm:$0xff]
      %v351 = vld [vmem:[%s348 + $0x10] sm:$0xff]
      %v352 = vld [vmem:[%s348 + $0x18] sm:$0xff]
      %s353 = scalar_lea.vmem %s5, 1
      %v354 = vld [vmem:[%s353] sm:$0x1]
      %v356 = vlaneseq
      %v357 = vshrl.u32 %v356, 7
      %v358 = vsub.s32 0, %v357
      %v359 = vrot.slane %v354, %v358
      %v362 = vsel %vm273, %v347, 0
      %364 = vmatprep.subr.mxu0 0.0
      %365 = vmatpush1.msra.mxu0 %v349
      %366 = vmatprep.subr.mxu0 0.0
      %367 = vmatpush1.msra.mxu0 %v350
      %368 = vmatprep.subr.mxu0 0.0
      %369 = vmatpush1.msra.mxu0 %v351
      %370 = vmatprep.subr.mxu0 0.0
      %371 = vmatpush1.msra.mxu0 %v352
      %372 = vmatprep.subr.mxu0 0.0
      %373 = vmatpush1.msra.mxu0 0.0
      %374 = vmatprep.subr.mxu0 0.0
      %375 = vmatpush1.msra.mxu0 0.0
      %376 = vmatprep.subr.mxu0 0.0
      %377 = vmatpush1.msra.mxu0 0.0
      %378 = vmatprep.subr.mxu0 0.0
      %379 = vmatpush1.msra.mxu0 0.0
      %380 = vmatprep.subr.mxu0 0.0
      %381 = vmatpush1.msra.mxu0 0.0
      %382 = vmatprep.subr.mxu0 0.0
      %383 = vmatpush1.msra.mxu0 0.0
      %384 = vmatprep.subr.mxu0 0.0
      %385 = vmatpush1.msra.mxu0 0.0
      %386 = vmatprep.subr.mxu0 0.0
      %387 = vmatpush1.msra.mxu0 0.0
      %388 = vmatprep.subr.mxu0 0.0
      %389 = vmatpush1.msra.mxu0 0.0
      %390 = vmatprep.subr.mxu0 0.0
      %391 = vmatpush1.msra.mxu0 0.0
      %392 = vmatprep.subr.mxu0 0.0
      %393 = vmatpush1.msra.mxu0 0.0
      %394 = vmatprep.subr.mxu0 0.0
      %395 = vmatpush1.msra.mxu0 0.0
      %396 = vmatprep.subr.mxu0 0.0
      %397 = vmatpush1.msra.mxu0 0.0
      %398 = vmatprep.subr.mxu0 0.0
      %399 = vmatpush1.msra.mxu0 0.0
      %400 = vmatprep.subr.mxu0 0.0
      %401 = vmatpush1.msra.mxu0 0.0
      %402 = vmatprep.subr.mxu0 0.0
      %403 = vmatpush1.msra.mxu0 0.0
      %404 = vmatprep.subr.mxu0 0.0
      %405 = vmatpush1.msra.mxu0 0.0
      %406 = vmatprep.subr.mxu0 0.0
      %407 = vmatpush1.msra.mxu0 0.0
      %408 = vmatprep.subr.mxu0 0.0
      %409 = vmatpush1.msra.mxu0 0.0
      %410 = vmatprep.subr.mxu0 0.0
      %411 = vmatpush1.msra.mxu0 0.0
      %412 = vmatprep.subr.mxu0 0.0
      %413 = vmatpush1.msra.mxu0 0.0
      %414 = vmatprep.subr.mxu0 0.0
      %415 = vmatpush1.msra.mxu0 0.0
      %416 = vmatprep.subr.mxu0 0.0
      %417 = vmatpush1.msra.mxu0 0.0
      %418 = vmatprep.subr.mxu0 0.0
      %419 = vmatpush1.msra.mxu0 0.0
      %420 = vmatprep.subr.mxu0 0.0
      %421 = vmatpush1.msra.mxu0 0.0
      %422 = vmatprep.subr.mxu0 0.0
      %423 = vmatpush1.msra.mxu0 0.0
      %424 = vmatprep.subr.mxu0 0.0
      %425 = vmatpush1.msra.mxu0 0.0
      %426 = vmatprep.subr.mxu0 0.0
      %427 = vmatpush1.msra.mxu0 0.0
      %428 = vmatprep.mubr.f32.mxu0 0.0
      %429 = vmatmul.mubr.f32.gmra.mrb[0].mxu0 %v362
      %v430 = vpop.f32.mrb[0].mxu0
      %v431 = vadd.f32 %v359, %v430
      %v432 = vpop.f32.mrb[0].mxu0
      %433 = vdwg.mxu0
      %v434 = vmax.f32 %v431, 0.0
      %v435 = vld [vmem:[#allocation11] sm:$0xff]
      %v436 = vld [vmem:[#allocation11 + $0x8] sm:$0xff]
      %v437 = vld [vmem:[#allocation11 + $0x10] sm:$0xff]
      %v438 = vld [vmem:[#allocation11 + $0x18] sm:$0xff]
      %v439 = vld [vmem:[%s7] sm:$0x1]
      %v441 = vlaneseq
      %v442 = vshrl.u32 %v441, 7
      %v443 = vsub.s32 0, %v442
      %v444 = vrot.slane %v439, %v443
      %v447 = vsel %vm273, %v434, 0
      %449 = vmatprep.subr.mxu0 0.0
      %450 = vmatpush1.msra.mxu0 %v435
      %451 = vmatprep.subr.mxu0 0.0
      %452 = vmatpush1.msra.mxu0 %v436
      %453 = vmatprep.subr.mxu0 0.0
      %454 = vmatpush1.msra.mxu0 %v437
      %455 = vmatprep.subr.mxu0 0.0
      %456 = vmatpush1.msra.mxu0 %v438
      %457 = vmatprep.subr.mxu0 0.0
      %458 = vmatpush1.msra.mxu0 0.0
      %459 = vmatprep.subr.mxu0 0.0
      %460 = vmatpush1.msra.mxu0 0.0
      %461 = vmatprep.subr.mxu0 0.0
      %462 = vmatpush1.msra.mxu0 0.0
      %463 = vmatprep.subr.mxu0 0.0
      %464 = vmatpush1.msra.mxu0 0.0
      %465 = vmatprep.subr.mxu0 0.0
      %466 = vmatpush1.msra.mxu0 0.0
      %467 = vmatprep.subr.mxu0 0.0
      %468 = vmatpush1.msra.mxu0 0.0
      %469 = vmatprep.subr.mxu0 0.0
      %470 = vmatpush1.msra.mxu0 0.0
      %471 = vmatprep.subr.mxu0 0.0
      %472 = vmatpush1.msra.mxu0 0.0
      %473 = vmatprep.subr.mxu0 0.0
      %474 = vmatpush1.msra.mxu0 0.0
      %475 = vmatprep.subr.mxu0 0.0
      %476 = vmatpush1.msra.mxu0 0.0
      %477 = vmatprep.subr.mxu0 0.0
      %478 = vmatpush1.msra.mxu0 0.0
      %479 = vmatprep.subr.mxu0 0.0
      %480 = vmatpush1.msra.mxu0 0.0
      %481 = vmatprep.subr.mxu0 0.0
      %482 = vmatpush1.msra.mxu0 0.0
      %483 = vmatprep.subr.mxu0 0.0
      %484 = vmatpush1.msra.mxu0 0.0
      %485 = vmatprep.subr.mxu0 0.0
      %486 = vmatpush1.msra.mxu0 0.0
      %487 = vmatprep.subr.mxu0 0.0
      %488 = vmatpush1.msra.mxu0 0.0
      %489 = vmatprep.subr.mxu0 0.0
      %490 = vmatpush1.msra.mxu0 0.0
      %491 = vmatprep.subr.mxu0 0.0
      %492 = vmatpush1.msra.mxu0 0.0
      %493 = vmatprep.subr.mxu0 0.0
      %494 = vmatpush1.msra.mxu0 0.0
      %495 = vmatprep.subr.mxu0 0.0
      %496 = vmatpush1.msra.mxu0 0.0
      %497 = vmatprep.subr.mxu0 0.0
      %498 = vmatpush1.msra.mxu0 0.0
      %499 = vmatprep.subr.mxu0 0.0
      %500 = vmatpush1.msra.mxu0 0.0
      %501 = vmatprep.subr.mxu0 0.0
      %502 = vmatpush1.msra.mxu0 0.0
      %503 = vmatprep.subr.mxu0 0.0
      %504 = vmatpush1.msra.mxu0 0.0
      %505 = vmatprep.subr.mxu0 0.0
      %506 = vmatpush1.msra.mxu0 0.0
      %507 = vmatprep.subr.mxu0 0.0
      %508 = vmatpush1.msra.mxu0 0.0
      %509 = vmatprep.subr.mxu0 0.0
      %510 = vmatpush1.msra.mxu0 0.0
      %511 = vmatprep.subr.mxu0 0.0
      %512 = vmatpush1.msra.mxu0 0.0
      %513 = vmatprep.mubr.f32.mxu0 0.0
      %514 = vmatmul.mubr.f32.gmra.mrb[0].mxu0 %v447
      %v515 = vpop.f32.mrb[0].mxu0
      %v516 = vadd.f32 %v444, %v515
      %v517 = vpop.f32.mrb[0].mxu0
      %518 = vdwg.mxu0
      %519 = vst [vmem:[#allocation12] sm:$0x3] %v516
    $region61: #{tpu_custom_call.1} parent=1 // pred_fallthru
      _
    // Predicated region
    $region62: #{tpu_custom_call.1} parent=1 // pred_check
      _
    $region63: #{tpu_custom_call.1} parent=1 // pred_check_branch
      %521 = sbr.rel (0) target = $region65
    $region64: #{tpu_custom_call.1} parent=1 // pred_region
      %s523 = ssub.s32 32, 32
      %524 = vsyncadd [#allocation5], %s523
      %s526 = sshll.u32 [#allocation12], 4
      %s527 = int_to_ptr.vmem [resolvable:$true] %s526
      %529 = dma.vmem_to_hbm [thread:$0]  %s527, 32, %s8, [#allocation5]
    $region65: #{tpu_custom_call.1} parent=1 // pred_fallthru
      _
    // Predicated region
    $region66: #{tpu_custom_call.1} parent=1 // pred_check
      _
    $region67: #{tpu_custom_call.1} parent=1 // pred_check_branch
      %531 = sbr.rel (0) target = $region69
    $region68: #{tpu_custom_call.1} parent=1 // pred_region
      %532 = dma.done [#allocation5], 32
    $region69: #{tpu_custom_call.1} parent=1 // pred_fallthru
      _
    %533 = vsyncpa [#allocation4], 1
    %534 = vsyncpa [#allocation7], 1
    %535 = vsyncpa [#allocation10], 1
    %536 = vsyncpa [#allocation5], 1

</llo_original>
